<compile_context>
chip_gen: v7x
topology: tpu7x:2x2x1
jax: 0.10.0
libtpu: 0.0.40
codegen_flags: <defaults>
</compile_context>

<pallas_src>
import jax
import jax.numpy as jnp
from jax import lax
from jax.experimental import pallas as pl
from jax.experimental.pallas import tpu as pltpu

LANE = 128        # lane width (last-dim tile)
TM_TARGET = 512   # rows of 128 px per grid step: 3*512*128*4B = 768 KiB / f32 input block
CHUNK = 64        # rows per inner compute chunk (bounds live vregs; divides TM_TARGET)
_TINY = 1e-30     # divide guard


def _rgb_to_hsv(r, g, b):
    """Elementwise RGB->HSV (colorsys convention, channels in [0, 1]), f32 in/out."""
    maxc = jnp.maximum(jnp.maximum(r, g), b)
    minc = jnp.minimum(jnp.minimum(r, g), b)
    delta = maxc - minc

    # EUP approximate reciprocals (error ~2^-12, well inside the loss tolerance);
    # maximum(x, tiny) replaces the cmp+select zero guards.
    inv_max = pl.reciprocal(jnp.maximum(maxc, _TINY), approx=True)
    s = delta * inv_max                      # maxc == 0 -> delta == 0 -> s == 0

    inv_delta = pl.reciprocal(jnp.maximum(delta, _TINY), approx=True)
    r_is_max = r == maxc
    g_is_max = g == maxc
    # Hue numerator + sextant offset, then a single multiply by 1/delta:
    #   r max: (g-b)/delta + 0 ;  g max: (b-r)/delta + 2 ;  b max: (r-g)/delta + 4
    diff = jnp.where(r_is_max, g - b, jnp.where(g_is_max, b - r, r - g))
    off = jnp.where(r_is_max, 0.0, jnp.where(g_is_max, 2.0, 4.0))
    h = (off + diff * inv_delta) * (1.0 / 6.0)
    # delta == 0 implies r == g == b == maxc -> r_is_max branch, diff == 0 -> h == 0,
    # so no extra where(delta == 0, 0, h) is needed.  h - floor(h) == h % 1.0.
    h = h - jnp.floor(h)
    return h, s, maxc


def _fold8(sq):
    """(rows, 128) -> (8, 128): fold sublane groups with pure VPU adds."""
    rows = sq.shape[0]
    if rows % 8 == 0:
        return sq.reshape(rows // 8, 8, LANE).sum(axis=0)
    # Small-image remainder (rows not a multiple of 8): full sublane reduce (XLU)
    # placed into sublane 0 of an (8, 128) slab.
    row_sum = jnp.sum(sq, axis=0, keepdims=True)                    # (1, LANE)
    sub = lax.broadcasted_iota(jnp.int32, (8, LANE), 0)
    return jnp.where(sub == 0, row_sum, 0.0)


def _make_kernel(tm, rows_total, need_mask):
    n_full = tm // CHUNK
    rem = tm % CHUNK

    def chunk_sq_sum(gen_ref, orig_ref, row0, csize, base_row):
        # Load one 64-row (or remainder) slice per channel; cast to f32 in VMEM.
        rg = gen_ref[0, pl.ds(row0, csize), :].astype(jnp.float32)
        gg = gen_ref[1, pl.ds(row0, csize), :].astype(jnp.float32)
        bg = gen_ref[2, pl.ds(row0, csize), :].astype(jnp.float32)
        ro = orig_ref[0, pl.ds(row0, csize), :].astype(jnp.float32)
        go = orig_ref[1, pl.ds(row0, csize), :].astype(jnp.float32)
        bo = orig_ref[2, pl.ds(row0, csize), :].astype(jnp.float32)

        hg, sg, vg = _rgb_to_hsv(rg, gg, bg)
        ho, so, vo = _rgb_to_hsv(ro, go, bo)
        dh = ho - hg
        ds = so - sg
        dv = vo - vg
        sq = dh * dh + ds * ds + dv * dv                            # (csize, 128)

        if need_mask:
            # Last grid step only partially valid: zero rows past the real data.
            rid = base_row + row0 + lax.broadcasted_iota(jnp.int32, (csize, LANE), 0)
            sq = jnp.where(rid < rows_total, sq, 0.0)
        return _fold8(sq)

    def kernel(gen_ref, orig_ref, out_ref):
        # gen_ref / orig_ref : (3, tm, 128) channel-major VMEM tiles (R/G/B planes)
        # out_ref            : (8, 128) per-batch-element accumulator slab
        @pl.when(pl.program_id(1) == 0)
        def _():
            out_ref[...] = jnp.zeros_like(out_ref)

        base_row = pl.program_id(1) * tm

        acc = jnp.zeros((8, LANE), jnp.float32)
        if n_full > 0:
            def body(j, a):
                row0 = pl.multiple_of(j * CHUNK, CHUNK)
                return a + chunk_sq_sum(gen_ref, orig_ref, row0, CHUNK, base_row)
            acc = lax.fori_loop(0, n_full, body, acc, unroll=True)
        if rem > 0:
            acc = acc + chunk_sq_sum(gen_ref, orig_ref, n_full * CHUNK, rem, base_row)

        out_ref[...] += acc

    return kernel


@jax.jit
def color_loss(generated_img, original_img):
    """ColorLoss.forward. Inputs: NCHW [B, 3, H, W] RGB in [0, 1]."""
    B, C, H, W = generated_img.shape
    assert C == 3, "ColorLoss expects 3-channel RGB images"
    n_px = B * H * W
    hw = H * W

    # Free (bitcast) reshapes: keep NCHW order and native dtype, no HBM copies.
    gen = generated_img.reshape(B, 3, hw)
    orig = original_img.reshape(B, 3, hw)

    pad = (-hw) % LANE
    if pad:
        # TODO(synk): rare H*W % 128 != 0 case costs one HBM pad copy; identical
        # zero padding on both images contributes exactly zero HSV error.
        gen = jnp.pad(gen, ((0, 0), (0, 0), (0, pad)))
        orig = jnp.pad(orig, ((0, 0), (0, 0), (0, pad)))
    rows = (hw + pad) // LANE

    gen = gen.reshape(B, 3, rows, LANE)
    orig = orig.reshape(B, 3, rows, LANE)

    if rows <= TM_TARGET:
        tm, steps = rows, 1            # one full-height block ("equal full dim" rule)
    else:
        tm = TM_TARGET                 # multiple of 8 and of CHUNK
        steps = pl.cdiv(rows, tm)
    need_mask = (rows % tm) != 0       # last block only partially covered

    kernel = _make_kernel(tm, rows, need_mask)

    dtype_bytes = jnp.dtype(generated_img.dtype).itemsize
    cost = pl.CostEstimate(
        flops=60 * n_px,
        transcendentals=4 * n_px,
        bytes_accessed=2 * 3 * n_px * dtype_bytes + B * 8 * LANE * 4,
    )

    partial = pl.pallas_call(
        kernel,
        out_shape=jax.ShapeDtypeStruct((B, 8, LANE), jnp.float32),
        grid_spec=pltpu.PrefetchScalarGridSpec(
            num_scalar_prefetch=0,
            grid=(B, steps),
            in_specs=[
                pl.BlockSpec((None, 3, tm, LANE), lambda b, i: (b, 0, i, 0)),
                pl.BlockSpec((None, 3, tm, LANE), lambda b, i: (b, 0, i, 0)),
            ],
            out_specs=pl.BlockSpec((None, 8, LANE), lambda b, i: (b, 0, 0)),
        ),
        compiler_params=pltpu.CompilerParams(
            dimension_semantics=("parallel", "arbitrary"),
        ),
        cost_estimate=cost,
    )(gen, orig)

    # hue_loss + saturation_loss + value_loss, each a mean over n_px elements.
    return jnp.sum(partial) / n_px


def _color_loss_ref(generated_img, original_img):
    """Pure-JAX reference (exact divides) for correctness checking."""
    def hsv(x):
        r, g, b = x[:, 0], x[:, 1], x[:, 2]
        maxc = jnp.maximum(jnp.maximum(r, g), b)
        minc = jnp.minimum(jnp.minimum(r, g), b)
        v = maxc
        delta = maxc - minc
        s = jnp.where(maxc == 0.0, 0.0, delta / jnp.where(maxc == 0.0, 1.0, maxc))
        sd = jnp.where(delta == 0.0, 1.0, delta)
        rc, gc, bc = (maxc - r) / sd, (maxc - g) / sd, (maxc - b) / sd
        h = jnp.where(r == maxc, bc - gc,
                      jnp.where(g == maxc, 2.0 + rc - bc, 4.0 + gc - rc))
        h = (h / 6.0) % 1.0
        h = jnp.where(delta == 0.0, 0.0, h)
        return h, s, v

    hg, sg, vg = hsv(generated_img.astype(jnp.float32))
    ho, so, vo = hsv(original_img.astype(jnp.float32))
    return (jnp.mean((ho - hg) ** 2) + jnp.mean((so - sg) ** 2)
            + jnp.mean((vo - vg) ** 2))


if __name__ == "__main__":
    key = jax.random.PRNGKey(0)
    k1, k2 = jax.random.split(key)
    B, C, H, W = 2, 3, 16, 16
    generated_img = jax.random.uniform(k1, (B, C, H, W), dtype=jnp.float32)
    original_img = jax.random.uniform(k2, (B, C, H, W), dtype=jnp.float32)

    loss = color_loss(generated_img, original_img)
    jax.block_until_ready(loss)

    # Sanity: finite, non-negative scalar matching the pure-JAX reference
    # (loose tolerance: kernel uses approximate EUP reciprocals).
    ref = _color_loss_ref(generated_img, original_img)
    assert loss.shape == ()
    assert bool(jnp.isfinite(loss)) and float(loss) >= 0.0
    assert abs(float(loss) - float(ref)) <= 2e-2 * abs(float(ref)) + 1e-3, (
        float(loss), float(ref))

    print("KERNEL_OK")
</pallas_src>

<mosaic_0001>
module attributes {stable_mosaic.version = 11 : i64} {
  func.func @kernel(%arg0: i32, %arg1: i32, %arg2: memref<1x3x2x128xf32, #tpu.memory_space<vmem>>, %arg3: memref<1x3x2x128xf32, #tpu.memory_space<vmem>>, %arg4: memref<1x8x128xf32, #tpu.memory_space<vmem>>) attributes {dimension_semantics = [#tpu.dimension_semantics<parallel>, #tpu.dimension_semantics<arbitrary>], iteration_bounds = array<i64: 2, 1>, scalar_prefetch = 0 : i64, scratch_operands = 0 : i64, tpu.core_type = #tpu.core_type<tc>, window_params = [{transform_indices = @transform_0, window_bounds = array<i64: 1, 3, 2, 128>}, {transform_indices = @transform_1, window_bounds = array<i64: 1, 3, 2, 128>}, {transform_indices = @transform_2, window_bounds = array<i64: 1, 8, 128>}]} {
    %c0_i32 = arith.constant 0 : i32
    %0 = arith.cmpi eq, %arg1, %c0_i32 : i32
    %1 = arith.extui %0 : i1 to i32
    %c0_i32_0 = arith.constant 0 : i32
    %2 = arith.cmpi ne, %1, %c0_i32_0 : i32
    scf.if %2 {
      %cst_43 = arith.constant 0.000000e+00 : f32
      %100 = vector.broadcast %cst_43 : f32 to vector<8x128xf32>
      %c0_44 = arith.constant 0 : index
      %c0_45 = arith.constant 0 : index
      %c0_46 = arith.constant 0 : index
      %101 = vector.load %arg4[%c0_44, %c0_45, %c0_46] : memref<1x8x128xf32, #tpu.memory_space<vmem>>, vector<1x8x128xf32>
      %102 = vector.shape_cast %101 : vector<1x8x128xf32> to vector<8x128xf32>
      %103 = vector.shape_cast %100 : vector<8x128xf32> to vector<1x8x128xf32>
      tpu.vector_store %arg4[%c0_44, %c0_45, %c0_46], %103 {strides = array<i32>} : memref<1x8x128xf32, #tpu.memory_space<vmem>>, vector<1x8x128xf32>,
    } else {
    }
    %cst = arith.constant 0.000000e+00 : f32
    %3 = vector.broadcast %cst : f32 to vector<8x128xf32>
    %c0 = arith.constant 0 : index
    %c0_1 = arith.constant 0 : index
    %c0_2 = arith.constant 0 : index
    %c0_3 = arith.constant 0 : index
    %4 = vector.load %arg2[%c0, %c0_1, %c0_2, %c0_3] : memref<1x3x2x128xf32, #tpu.memory_space<vmem>>, vector<1x1x2x128xf32>
    %5 = vector.shape_cast %4 : vector<1x1x2x128xf32> to vector<2x128xf32>
    %c0_4 = arith.constant 0 : index
    %c1 = arith.constant 1 : index
    %c0_5 = arith.constant 0 : index
    %c0_6 = arith.constant 0 : index
    %6 = vector.load %arg2[%c0_4, %c1, %c0_5, %c0_6] : memref<1x3x2x128xf32, #tpu.memory_space<vmem>>, vector<1x1x2x128xf32>
    %7 = vector.shape_cast %6 : vector<1x1x2x128xf32> to vector<2x128xf32>
    %c0_7 = arith.constant 0 : index
    %c2 = arith.constant 2 : index
    %c0_8 = arith.constant 0 : index
    %c0_9 = arith.constant 0 : index
    %8 = vector.load %arg2[%c0_7, %c2, %c0_8, %c0_9] : memref<1x3x2x128xf32, #tpu.memory_space<vmem>>, vector<1x1x2x128xf32>
    %9 = vector.shape_cast %8 : vector<1x1x2x128xf32> to vector<2x128xf32>
    %c0_10 = arith.constant 0 : index
    %c0_11 = arith.constant 0 : index
    %c0_12 = arith.constant 0 : index
    %c0_13 = arith.constant 0 : index
    %10 = vector.load %arg3[%c0_10, %c0_11, %c0_12, %c0_13] : memref<1x3x2x128xf32, #tpu.memory_space<vmem>>, vector<1x1x2x128xf32>
    %11 = vector.shape_cast %10 : vector<1x1x2x128xf32> to vector<2x128xf32>
    %c0_14 = arith.constant 0 : index
    %c1_15 = arith.constant 1 : index
    %c0_16 = arith.constant 0 : index
    %c0_17 = arith.constant 0 : index
    %12 = vector.load %arg3[%c0_14, %c1_15, %c0_16, %c0_17] : memref<1x3x2x128xf32, #tpu.memory_space<vmem>>, vector<1x1x2x128xf32>
    %13 = vector.shape_cast %12 : vector<1x1x2x128xf32> to vector<2x128xf32>
    %c0_18 = arith.constant 0 : index
    %c2_19 = arith.constant 2 : index
    %c0_20 = arith.constant 0 : index
    %c0_21 = arith.constant 0 : index
    %14 = vector.load %arg3[%c0_18, %c2_19, %c0_20, %c0_21] : memref<1x3x2x128xf32, #tpu.memory_space<vmem>>, vector<1x1x2x128xf32>
    %15 = vector.shape_cast %14 : vector<1x1x2x128xf32> to vector<2x128xf32>
    %16 = arith.maximumf %5, %7 : vector<2x128xf32>
    %17 = arith.maximumf %16, %9 : vector<2x128xf32>
    %18 = arith.minimumf %5, %7 : vector<2x128xf32>
    %19 = arith.minimumf %18, %9 : vector<2x128xf32>
    %20 = arith.subf %17, %19 : vector<2x128xf32>
    %cst_22 = arith.constant 1.000000e-30 : f32
    %21 = vector.broadcast %cst_22 : f32 to vector<2x128xf32>
    %22 = arith.maximumf %17, %21 : vector<2x128xf32>
    %23 = tpu.reciprocal %22 {approx = true} : vector<2x128xf32> -> vector<2x128xf32>
    %24 = arith.mulf %20, %23 : vector<2x128xf32>
    %cst_23 = arith.constant 1.000000e-30 : f32
    %25 = vector.broadcast %cst_23 : f32 to vector<2x128xf32>
    %26 = arith.maximumf %20, %25 : vector<2x128xf32>
    %27 = tpu.reciprocal %26 {approx = true} : vector<2x128xf32> -> vector<2x128xf32>
    %28 = arith.cmpf oeq, %5, %17 : vector<2x128xf32>
    %29 = arith.cmpf oeq, %7, %17 : vector<2x128xf32>
    %30 = arith.subf %7, %9 : vector<2x128xf32>
    %31 = arith.subf %9, %5 : vector<2x128xf32>
    %32 = arith.subf %5, %7 : vector<2x128xf32>
    %33 = arith.select %29, %31, %32 : vector<2x128xi1>, vector<2x128xf32>
    %34 = arith.select %28, %30, %33 : vector<2x128xi1>, vector<2x128xf32>
    %cst_24 = arith.constant 2.000000e+00 : f32
    %cst_25 = arith.constant 4.000000e+00 : f32
    %35 = vector.broadcast %cst_24 : f32 to vector<2x128xf32>
    %36 = vector.broadcast %cst_25 : f32 to vector<2x128xf32>
    %37 = arith.select %29, %35, %36 : vector<2x128xi1>, vector<2x128xf32>
    %cst_26 = arith.constant 0.000000e+00 : f32
    %38 = vector.broadcast %cst_26 : f32 to vector<2x128xf32>
    %39 = arith.select %28, %38, %37 : vector<2x128xi1>, vector<2x128xf32>
    %40 = arith.mulf %34, %27 : vector<2x128xf32>
    %41 = arith.addf %39, %40 : vector<2x128xf32>
    %cst_27 = arith.constant 0.166666672 : f32
    %42 = vector.broadcast %cst_27 : f32 to vector<2x128xf32>
    %43 = arith.mulf %41, %42 : vector<2x128xf32>
    %44 = math.floor %43 : vector<2x128xf32>
    %45 = arith.subf %43, %44 : vector<2x128xf32>
    %46 = arith.maximumf %11, %13 : vector<2x128xf32>
    %47 = arith.maximumf %46, %15 : vector<2x128xf32>
    %48 = arith.minimumf %11, %13 : vector<2x128xf32>
    %49 = arith.minimumf %48, %15 : vector<2x128xf32>
    %50 = arith.subf %47, %49 : vector<2x128xf32>
    %cst_28 = arith.constant 1.000000e-30 : f32
    %51 = vector.broadcast %cst_28 : f32 to vector<2x128xf32>
    %52 = arith.maximumf %47, %51 : vector<2x128xf32>
    %53 = tpu.reciprocal %52 {approx = true} : vector<2x128xf32> -> vector<2x128xf32>
    %54 = arith.mulf %50, %53 : vector<2x128xf32>
    %cst_29 = arith.constant 1.000000e-30 : f32
    %55 = vector.broadcast %cst_29 : f32 to vector<2x128xf32>
    %56 = arith.maximumf %50, %55 : vector<2x128xf32>
    %57 = tpu.reciprocal %56 {approx = true} : vector<2x128xf32> -> vector<2x128xf32>
    %58 = arith.cmpf oeq, %11, %47 : vector<2x128xf32>
    %59 = arith.cmpf oeq, %13, %47 : vector<2x128xf32>
    %60 = arith.subf %13, %15 : vector<2x128xf32>
    %61 = arith.subf %15, %11 : vector<2x128xf32>
    %62 = arith.subf %11, %13 : vector<2x128xf32>
    %63 = arith.select %59, %61, %62 : vector<2x128xi1>, vector<2x128xf32>
    %64 = arith.select %58, %60, %63 : vector<2x128xi1>, vector<2x128xf32>
    %cst_30 = arith.constant 2.000000e+00 : f32
    %cst_31 = arith.constant 4.000000e+00 : f32
    %65 = vector.broadcast %cst_30 : f32 to vector<2x128xf32>
    %66 = vector.broadcast %cst_31 : f32 to vector<2x128xf32>
    %67 = arith.select %59, %65, %66 : vector<2x128xi1>, vector<2x128xf32>
    %cst_32 = arith.constant 0.000000e+00 : f32
    %68 = vector.broadcast %cst_32 : f32 to vector<2x128xf32>
    %69 = arith.select %58, %68, %67 : vector<2x128xi1>, vector<2x128xf32>
    %70 = arith.mulf %64, %57 : vector<2x128xf32>
    %71 = arith.addf %69, %70 : vector<2x128xf32>
    %cst_33 = arith.constant 0.166666672 : f32
    %72 = vector.broadcast %cst_33 : f32 to vector<2x128xf32>
    %73 = arith.mulf %71, %72 : vector<2x128xf32>
    %74 = math.floor %73 : vector<2x128xf32>
    %75 = arith.subf %73, %74 : vector<2x128xf32>
    %76 = arith.subf %75, %45 : vector<2x128xf32>
    %77 = arith.subf %54, %24 : vector<2x128xf32>
    %78 = arith.subf %47, %17 : vector<2x128xf32>
    %79 = arith.mulf %76, %76 : vector<2x128xf32>
    %80 = arith.mulf %77, %77 : vector<2x128xf32>
    %81 = arith.addf %79, %80 : vector<2x128xf32>
    %82 = arith.mulf %78, %78 : vector<2x128xf32>
    %83 = arith.addf %81, %82 : vector<2x128xf32>
    %cst_34 = arith.constant dense<0.000000e+00> : vector<128xf32>
    %84 = vector.multi_reduction <add>, %83, %cst_34 [0] : vector<2x128xf32> to vector<128xf32>
    %85 = vector.shape_cast %84 : vector<128xf32> to vector<1x128xf32>
    %86 = tpu.iota {dimensions = array<i32: 0>} : vector<8x128xi32>
    %c0_i32_35 = arith.constant 0 : i32
    %87 = vector.broadcast %c0_i32_35 : i32 to vector<8x128xi32>
    %88 = arith.cmpi eq, %86, %87 : vector<8x128xi32>
    %cst_36 = arith.constant 0.000000e+00 : f32
    %89 = vector.shape_cast %85 : vector<1x128xf32> to vector<1x128xf32>
    %90 = vector.broadcast %89 : vector<1x128xf32> to vector<8x128xf32>
    %91 = vector.broadcast %cst_36 : f32 to vector<8x128xf32>
    %92 = arith.select %88, %90, %91 : vector<8x128xi1>, vector<8x128xf32>
    %93 = arith.addf %3, %92 : vector<8x128xf32>
    %c0_37 = arith.constant 0 : index
    %c0_38 = arith.constant 0 : index
    %c0_39 = arith.constant 0 : index
    %94 = vector.load %arg4[%c0_37, %c0_38, %c0_39] : memref<1x8x128xf32, #tpu.memory_space<vmem>>, vector<1x8x128xf32>
    %95 = vector.shape_cast %94 : vector<1x8x128xf32> to vector<8x128xf32>
    %96 = arith.addf %95, %93 : vector<8x128xf32>
    %c0_40 = arith.constant 0 : index
    %c0_41 = arith.constant 0 : index
    %c0_42 = arith.constant 0 : index
    %97 = vector.load %arg4[%c0_40, %c0_41, %c0_42] : memref<1x8x128xf32, #tpu.memory_space<vmem>>, vector<1x8x128xf32>
    %98 = vector.shape_cast %97 : vector<1x8x128xf32> to vector<8x128xf32>
    %99 = vector.shape_cast %96 : vector<8x128xf32> to vector<1x8x128xf32>
    tpu.vector_store %arg4[%c0_40, %c0_41, %c0_42], %99 {strides = array<i32>} : memref<1x8x128xf32, #tpu.memory_space<vmem>>, vector<1x8x128xf32>,
    return
  }
  func.func @transform_0(%arg0: i32, %arg1: i32) -> (i32, i32, i32, i32) {
    %c0_i32 = arith.constant 0 : i32
    %c0_i32_0 = arith.constant 0 : i32
    %c0_i32_1 = arith.constant 0 : i32
    return %arg0, %c0_i32, %arg1, %c0_i32_0 : i32, i32, i32, i32
  }
  func.func @transform_1(%arg0: i32, %arg1: i32) -> (i32, i32, i32, i32) {
    %c0_i32 = arith.constant 0 : i32
    %c0_i32_0 = arith.constant 0 : i32
    %c0_i32_1 = arith.constant 0 : i32
    return %arg0, %c0_i32, %arg1, %c0_i32_0 : i32, i32, i32, i32
  }
  func.func @transform_2(%arg0: i32, %arg1: i32) -> (i32, i32, i32) {
    %c0_i32 = arith.constant 0 : i32
    %c0_i32_0 = arith.constant 0 : i32
    %c0_i32_1 = arith.constant 0 : i32
    return %arg0, %c0_i32, %c0_i32_0 : i32, i32, i32
  }
}

</mosaic_0001>

<llo_original>
// kernel: color_loss.1
$region0: #{color_loss.1}
  #allocation0 [shape = 'u32[]', space=smem, size = 0x4, offset = 0x4, fixed_abs, tag = 'smem constant byte address 0x4 - core index']
  #allocation1 [shape = 'u32[144,128]{1,0:T(1,128)}', space=vmem, size = 0x12000, scoped, tag = 'internal scratch']
  %s0 = inlined_call_operand.vmem [shape: f32[2,3,2,128], index: 0, kind: input, shape index: {}]
  %s1 = inlined_call_operand.vmem [shape: f32[2,3,2,128], index: 1, kind: input, shape index: {}]
  %s2 = inlined_call_operand.vmem [shape: f32[2,8,128], index: 2, kind: output, shape index: {}]
  %s3 = sld [smem:[#allocation0]]
  $region45: #{color_loss.1} parent=0
    _
  %s5 = ssub.s32 1, %s3
  %s6 = scalar_select 0, %s5, %s3
  loop: start=0, step=1, limit=4
  $region2: #{color_loss.1} parent=0 // loop_pre_header
    _
  $region3: #{color_loss.1} parent=0 // loop_header
    %s8 = sphi 0, %s12
    %p9 = scmp.ge.s32.totalorder %s8, 4
    %s15 = sphi 0, %s27
    %s16 = sphi 0, %s23
    %s17 = sphi 0, %s15
    %s18 = sphi 0, %s16
    %s19 = sphi 0, %s17
    %s20 = sphi 0, %s18
    %s32 = sphi 0, %s34
    %s35 = sphi 0, %s32
    %s36 = sphi 0, %s35
    %s52 = sphi 0, %s36
    %s60 = sphi 0, %s62
    %s63 = sphi 0, %s60
    %s64 = sphi 0, %s63
    %s80 = sphi 0, %s64
    %s86 = sphi 0, %s88
    %s89 = sphi 0, %s86
    %s90 = sphi 0, %s89
    %s106 = sphi 0, %s90
  $region4: #{color_loss.1} parent=0 // loop_header_branch
    %11 = sbr.rel (%p9) target = $region8
  $region5: #{color_loss.1} parent=0 // loop_body
    %s13 = ssub.s32 %s8, 1
    %s14 = ssub.s32 %s8, 2
    %s21 = sadd.s32 1, %s16
    %p22 = scmp.ge.s32.totalorder %s21, 1
    %s23 = scalar_select %p22, 0, %s21
    %s24 = sadd.s32 1, %s15
    %s25 = scalar_select %p22, %s24, %s15
    %p26 = scmp.ge.s32.totalorder %s25, 2
    %s27 = scalar_select %p26, 0, %s25
    %s28 = ssub.s32 %s15, %s27
    %s29 = ssub.s32 %s16, %s23
    %s30 = sor.u32 %s28, %s29
    %p31 = scmp.eq.s32.totalorder %s30, 0
    %s33 = sadd.s32 %s32, 1
    %s34 = scalar_select %p31, %s32, %s33
    %p37 = pneg %p31
    %p38 = scmp.eq.s32.totalorder %s8, 1
    %p39 = por %p37, %p38
    %p40 = scmp.ne.s32.totalorder %s32, %s35
    %p41 = scmp.eq.s32.totalorder %s8, 0
    %p42 = por %p40, %p41
    %p43 = scmp.ne.s32.totalorder %s32, %s35
    %p44 = scmp.eq.s32.totalorder %s13, 1
    %p45 = por %p43, %p44
    %p46 = scmp.ne.s32.totalorder %s35, %s36
    %p47 = scmp.eq.s32.totalorder %s13, 0
    %p48 = por %p46, %p47
    %p49 = scmp.ne.s32.totalorder %s35, %s36
    %p50 = scmp.eq.s32.totalorder %s14, 1
    %p51 = por %p49, %p50
    %p53 = scmp.ne.s32.totalorder %s36, %s52
    %p54 = scmp.eq.s32.totalorder %s14, 0
    %p55 = por %p53, %p54
    %s56 = ssub.s32 %s15, %s27
    %s57 = ssub.s32 %s16, %s23
    %s58 = sor.u32 %s56, %s57
    %p59 = scmp.eq.s32.totalorder %s58, 0
    %s61 = sadd.s32 %s60, 1
    %s62 = scalar_select %p59, %s60, %s61
    %p65 = pneg %p59
    %p66 = scmp.eq.s32.totalorder %s8, 1
    %p67 = por %p65, %p66
    %p68 = scmp.ne.s32.totalorder %s60, %s63
    %p69 = scmp.eq.s32.totalorder %s8, 0
    %p70 = por %p68, %p69
    %p71 = scmp.ne.s32.totalorder %s60, %s63
    %p72 = scmp.eq.s32.totalorder %s13, 1
    %p73 = por %p71, %p72
    %p74 = scmp.ne.s32.totalorder %s63, %s64
    %p75 = scmp.eq.s32.totalorder %s13, 0
    %p76 = por %p74, %p75
    %p77 = scmp.ne.s32.totalorder %s63, %s64
    %p78 = scmp.eq.s32.totalorder %s14, 1
    %p79 = por %p77, %p78
    %p81 = scmp.ne.s32.totalorder %s64, %s80
    %p82 = scmp.eq.s32.totalorder %s14, 0
    %p83 = por %p81, %p82
    %s84 = ssub.s32 %s15, %s27
    %p85 = scmp.eq.s32.totalorder %s84, 0
    %s87 = sadd.s32 %s86, 1
    %s88 = scalar_select %p85, %s86, %s87
    %p91 = pneg %p85
    %p92 = scmp.eq.s32.totalorder %s8, 1
    %p93 = por %p91, %p92
    %p94 = scmp.ne.s32.totalorder %s86, %s89
    %p95 = scmp.eq.s32.totalorder %s8, 0
    %p96 = por %p94, %p95
    %p97 = scmp.ne.s32.totalorder %s86, %s89
    %p98 = scmp.eq.s32.totalorder %s13, 1
    %p99 = por %p97, %p98
    %p100 = scmp.ne.s32.totalorder %s89, %s90
    %p101 = scmp.eq.s32.totalorder %s13, 0
    %p102 = por %p100, %p101
    %p103 = scmp.ne.s32.totalorder %s89, %s90
    %p104 = scmp.eq.s32.totalorder %s14, 1
    %p105 = por %p103, %p104
    %p107 = scmp.ne.s32.totalorder %s90, %s106
    %p108 = scmp.eq.s32.totalorder %s14, 0
    %p109 = por %p107, %p108
    %p110 = scmp.le.s32.totalorder 1, %s8
    %p111 = scmp.lt.s32.totalorder %s8, 3
    %p112 = pnand %p110, %p111
    %p113 = pneg %p112
    // Predicated region
    $region9: #{color_loss.1} parent=5 // pred_check
      _
    $region10: #{color_loss.1} parent=5 // pred_check_branch
      %115 = sbr.rel (%p112) target = $region12
    $region11: #{color_loss.1} parent=5 // pred_region
      %s116 = ssub.s32 %s8, 1
    $region12: #{color_loss.1} parent=5 // pred_fallthru
      _
    %p117 = scmp.lt.s32.totalorder %s8, 2
    // Predicated region
    $region13: #{color_loss.1} parent=5 // pred_check
      %p118 = pneg %p117
    $region14: #{color_loss.1} parent=5 // pred_check_branch
      %120 = sbr.rel (%p118) target = $region16
    $region15: #{color_loss.1} parent=5 // pred_region
      // Predicated region
      $region17: #{color_loss.1} parent=15 // pred_check
        %p121 = pneg %p42
      $region18: #{color_loss.1} parent=15 // pred_check_branch
        %123 = sbr.rel (%p121) target = $region20
      $region19: #{color_loss.1} parent=15 // pred_region
        %p124 = scmp.lt.s32.totalorder %s15, 1
        %s125 = scalar_select %p124, %s15, 1
        %p126 = scmp.lt.s32.totalorder %s16, 0
        %s127 = scalar_select %p126, %s16, 0
        %s128 = smul.addr %s125, 3
        %s129 = sadd.s32 %s127, %s128
        %s130 = smul.addr %s129, 2
        %s131 = scalar_lea.vmem %s0, %s130
      $region20: #{color_loss.1} parent=15 // pred_fallthru
        _
      // Predicated region
      $region21: #{color_loss.1} parent=15 // pred_check
        %p132 = pneg %p70
      $region22: #{color_loss.1} parent=15 // pred_check_branch
        %134 = sbr.rel (%p132) target = $region24
      $region23: #{color_loss.1} parent=15 // pred_region
        %p135 = scmp.lt.s32.totalorder %s15, 1
        %s136 = scalar_select %p135, %s15, 1
        %p137 = scmp.lt.s32.totalorder %s16, 0
        %s138 = scalar_select %p137, %s16, 0
        %s139 = smul.addr %s136, 3
        %s140 = sadd.s32 %s138, %s139
        %s141 = smul.addr %s140, 2
        %s142 = scalar_lea.vmem %s1, %s141
      $region24: #{color_loss.1} parent=15 // pred_fallthru
        _
    $region16: #{color_loss.1} parent=5 // pred_fallthru
      _
    %p143 = scmp.le.s32.totalorder 1, %s8
    %p144 = scmp.lt.s32.totalorder %s8, 3
    %p145 = pnand %p143, %p144
    %p146 = pneg %p145
    // Predicated region
    $region25: #{color_loss.1} parent=5 // pred_check
      _
    $region26: #{color_loss.1} parent=5 // pred_check_branch
      %148 = sbr.rel (%p145) target = $region28
    $region27: #{color_loss.1} parent=5 // pred_region
      %s149 = ssub.s32 %s8, 1
      %p150 = scmp.lt.s32.totalorder %s17, 1
      %s151 = scalar_select %p150, %s17, 1
      %p152 = scmp.lt.s32.totalorder %s18, 0
      %s153 = scalar_select %p152, %s18, 0
      %s154 = smul.addr %s151, 3
      %s155 = sadd.s32 %s153, %s154
      %s156 = smul.addr %s155, 2
      %s157 = scalar_lea.vmem %s0, %s156
      %p158 = pneg %p48
      %p159 = pneg %p45
      %p160 = scmp.lt.s32.totalorder %s17, 1
      %s161 = scalar_select %p160, %s17, 1
      %p162 = scmp.lt.s32.totalorder %s18, 0
      %s163 = scalar_select %p162, %s18, 0
      %s164 = smul.addr %s161, 3
      %s165 = sadd.s32 %s163, %s164
      %s166 = smul.addr %s165, 2
      %s167 = scalar_lea.vmem %s1, %s166
      %p168 = pneg %p76
      %p169 = pneg %p73
      %p170 = pneg %p102
      %p171 = pneg %p99
      %p172 = scmp.lt.s32.totalorder %s17, 1
      %s173 = scalar_select %p172, %s17, 1
      %s174 = smul.addr %s173, 8
      %s175 = scalar_lea.vmem %s2, %s174
      %p176 = scmp.lt.s32.totalorder %s17, 1
      %s177 = scalar_select %p176, %s17, 1
      %p178 = scmp.lt.s32.totalorder %s18, 0
      %s179 = scalar_select %p178, %s18, 0
      %s180 = smul.addr %s177, 3
      %s181 = sadd.s32 %s179, %s180
      %s182 = smul.addr %s181, 2
      %s183 = scalar_lea.vmem %s0, %s182
      %p184 = scmp.lt.s32.totalorder %s17, 1
      %s185 = scalar_select %p184, %s17, 1
      %p186 = scmp.lt.s32.totalorder %s18, 0
      %s187 = scalar_select %p186, %s18, 0
      %s188 = smul.addr %s185, 3
      %s189 = sadd.s32 %s187, %s188
      %s190 = smul.addr %s189, 2
      %s191 = scalar_lea.vmem %s1, %s190
      %p192 = scmp.lt.s32.totalorder %s17, 1
      %s193 = scalar_select %p192, %s17, 1
      %s194 = smul.addr %s193, 8
      %s195 = scalar_lea.vmem %s2, %s194
      %p196 = scmp.eq.s32.totalorder %s18, 0
      // Predicated region
      $region29: #{color_loss.1} parent=27 // pred_check
        %p197 = pneg %p196
      $region30: #{color_loss.1} parent=27 // pred_check_branch
        %199 = sbr.rel (%p197) target = $region32
      $region31: #{color_loss.1} parent=27 // pred_region
        %200 = vst [vmem:[%s195] sm:$0xff] 0.0
      $region32: #{color_loss.1} parent=27 // pred_fallthru
        _
      %v201 = vld [vmem:[%s183] sm:$0x3]
      %s202 = scalar_lea.vmem %s183, 2
      %v203 = vld [vmem:[%s202] sm:$0x3]
      %s204 = scalar_lea.vmem %s183, 4
      %v205 = vld [vmem:[%s204] sm:$0x3]
      %v206 = vld [vmem:[%s191] sm:$0x3]
      %s207 = scalar_lea.vmem %s191, 2
      %v208 = vld [vmem:[%s207] sm:$0x3]
      %s209 = scalar_lea.vmem %s191, 4
      %v210 = vld [vmem:[%s209] sm:$0x3]
      %v211 = vmax.f32 %v201, %v203
      %v212 = vmax.f32 %v211, %v205
      %v213 = vmin.f32 %v201, %v203
      %v214 = vmin.f32 %v213, %v205
      %v215 = vsub.f32 %v212, %v214
      %v216 = vmax.f32 %v212, 1e-30
      %v217 = vrcp.pop %v216
      %v218 = vmul.f32 %v215, %v217
      %v219 = vmax.f32 %v215, 1e-30
      %v220 = vrcp.pop %v219
      %vm221 = vcmp.eq.f32.partialorder %v201, %v212
      %vm222 = vcmp.eq.f32.partialorder %v203, %v212
      %v223 = vsub.f32 %v203, %v205
      %v224 = vsub.f32 %v205, %v201
      %v225 = vsub.f32 %v201, %v203
      %v226 = vsel %vm222, %v224, %v225
      %v227 = vsel %vm221, %v223, %v226
      %v228 = vsel %vm222, 2.0, 4.0
      %v229 = vsel %vm221, 0.0, %v228
      %v230 = vmul.f32 %v227, %v220
      %v231 = vadd.f32 %v229, %v230
      %v232 = vmul.f32 %v231, 0.16666667
      %v233 = vfloor.f32 %v232
      %v234 = vsub.f32 %v232, %v233
      %v235 = vmax.f32 %v206, %v208
      %v236 = vmax.f32 %v235, %v210
      %v237 = vmin.f32 %v206, %v208
      %v238 = vmin.f32 %v237, %v210
      %v239 = vsub.f32 %v236, %v238
      %v240 = vmax.f32 %v236, 1e-30
      %v241 = vrcp.pop %v240
      %v242 = vmul.f32 %v239, %v241
      %v243 = vmax.f32 %v239, 1e-30
      %v244 = vrcp.pop %v243
      %vm245 = vcmp.eq.f32.partialorder %v206, %v236
      %vm246 = vcmp.eq.f32.partialorder %v208, %v236
      %v247 = vsub.f32 %v208, %v210
      %v248 = vsub.f32 %v210, %v206
      %v249 = vsub.f32 %v206, %v208
      %v250 = vsel %vm246, %v248, %v249
      %v251 = vsel %vm245, %v247, %v250
      %v252 = vsel %vm246, 2.0, 4.0
      %v253 = vsel %vm245, 0.0, %v252
      %v254 = vmul.f32 %v251, %v244
      %v255 = vadd.f32 %v253, %v254
      %v256 = vmul.f32 %v255, 0.16666667
      %v257 = vfloor.f32 %v256
      %v258 = vsub.f32 %v256, %v257
      %v259 = vsub.f32 %v258, %v234
      %v260 = vsub.f32 %v242, %v218
      %v261 = vsub.f32 %v236, %v212
      %v262 = vmul.f32 %v259, %v259
      %v263 = vmul.f32 %v260, %v260
      %v264 = vadd.f32 %v262, %v263
      %v265 = vmul.f32 %v261, %v261
      %v266 = vadd.f32 %v264, %v265
      %vm267 = vcmask 1041408
      %v268 = vsel %vm267, %v266, 0.0
      %v269 = vrot.slane %v268, 4
      %v270 = vadd.f32 %v268, %v269
      %v271 = vrot.slane %v270, 2
      %v272 = vadd.f32 %v270, %v271
      %v273 = vrot.slane %v272, 1
      %v274 = vadd.f32 %v272, %v273
      %v275 = vlaneseq
      %v276 = vshrl.u32 %v275, 7
      %vm277 = vcmp.eq.s32.totalorder %v276, 0
      %v278 = vsel %vm277, %v274, 0.0
      %v279 = vadd.f32 %v278, 0.0
      %v280 = vld [vmem:[%s195] sm:$0xff]
      %v281 = vadd.f32 %v280, %v279
      %282 = vst [vmem:[%s195] sm:$0xff] %v281
      %p283 = scmp.lt.s32.totalorder %s17, 1
      %s284 = scalar_select %p283, %s17, 1
      %s285 = smul.addr %s284, 8
      %s286 = scalar_lea.vmem %s2, %s285
      // Predicated region
      $region33: #{color_loss.1} parent=27 // pred_check
        %p287 = pneg %p99
      $region34: #{color_loss.1} parent=27 // pred_check_branch
        %289 = sbr.rel (%p287) target = $region36
      $region35: #{color_loss.1} parent=27 // pred_region
        _
      $region36: #{color_loss.1} parent=27 // pred_fallthru
        _
    $region28: #{color_loss.1} parent=5 // pred_fallthru
      _
    %p290 = scmp.le.s32.totalorder 2, %s8
    // Predicated region
    $region37: #{color_loss.1} parent=5 // pred_check
      %p291 = pneg %p290
    $region38: #{color_loss.1} parent=5 // pred_check_branch
      %293 = sbr.rel (%p291) target = $region40
    $region39: #{color_loss.1} parent=5 // pred_region
      %s294 = ssub.s32 %s8, 2
      // Predicated region
      $region41: #{color_loss.1} parent=39 // pred_check
        %p295 = pneg %p105
      $region42: #{color_loss.1} parent=39 // pred_check_branch
        %297 = sbr.rel (%p295) target = $region44
      $region43: #{color_loss.1} parent=39 // pred_region
        %p298 = scmp.lt.s32.totalorder %s19, 1
        %s299 = scalar_select %p298, %s19, 1
        %s300 = smul.addr %s299, 8
        %s301 = scalar_lea.vmem %s2, %s300
      $region44: #{color_loss.1} parent=39 // pred_fallthru
        _
    $region40: #{color_loss.1} parent=5 // pred_fallthru
      _
  $region6: #{color_loss.1} parent=0 // loop_footer
    %s12 = sadd.s32 1, %s8
  $region7: #{color_loss.1} parent=0 // loop_footer_branch
    %7 = sbr.rel target = $region3
  $region8: #{color_loss.1} parent=0 // loop_exit
    _

</llo_original>
